<compile_context>
chip_gen: v5e
topology: v5e:2x2
jax: 0.10.0
libtpu: 0.0.40
codegen_flags: <defaults>
</compile_context>

<pallas_src>
from functools import partial

import jax
import jax.numpy as jnp
from jax import lax
from jax.experimental import pallas as pl
from jax.experimental.pallas import tpu as pltpu


def _round_up(n, m):
    return ((n + m - 1) // m) * m


def _pick_tile(bt, block_bt):
    """Rows per grid step: multiple of 8, capped at ceil(BT/2) (rounded to 8) so
    the grid keeps >= 2 steps whenever BT allows (keeps both v7x TensorCores busy
    through dimension_semantics=("parallel",))."""
    if bt <= 8:
        return 8
    two_step_cap = _round_up((bt + 1) // 2, 8)
    return max(8, min(_round_up(block_bt, 8), two_step_cap, _round_up(bt, 8)))


def _silu(x, approx):
    if approx:
        # EUP reciprocal (free slot) instead of a multi-op f32 VPU divide.
        return x * pl.reciprocal(1.0 + jnp.exp(-x), approx=True)
    return x * jax.nn.sigmoid(x)


def _fullband_kernel(x_ref, a_red_ref, wsq_ref, bsq_ref, mcorr_ref, btilg_ref,
                     wfused_ref, bfused_ref, o_ref, *, approx_silu=False):
    f32 = jnp.float32
    x = x_ref[...].astype(f32)                                     # [TB, C*Fin]

    # ---- LayerNorm statistics over C, per (row, frequency bin); eps = 1e-5.
    # 1/C is folded into a_red; var = E[x^2] - mean^2 (both reductions share RHS
    # and are independent -> better MXU overlap).
    a_red = a_red_ref[...]                                         # [CF, Fin]
    mean_c = jnp.dot(x, a_red, preferred_element_type=f32)         # [TB, Fin]
    ex2_c = jnp.dot(x * x, a_red, preferred_element_type=f32)      # [TB, Fin]
    rstd_c = lax.rsqrt(ex2_c - mean_c * mean_c + 1e-5)             # [TB, Fin]

    # ---- squeeze (C->G), gamma/beta pre-folded into weight/bias.  The mean and
    # rstd corrections are applied on the narrow [TB, G*Fin] tensor via tiny
    # [TB,Fin]@[Fin,GF] matmuls (exact algebra, no CF-wide broadcasts).
    mxu = wsq_ref.dtype
    t1 = jnp.dot(x.astype(mxu), wsq_ref[...], preferred_element_type=f32)    # [TB, GF]
    corr = jnp.dot(mean_c, mcorr_ref[...], preferred_element_type=f32)       # [TB, GF]
    rstd_b = jnp.dot(rstd_c, btilg_ref[...], preferred_element_type=f32)     # [TB, GF]
    s = (t1 - corr) * rstd_b + bsq_ref[...]
    s = _silu(s, approx_silu)

    # ---- fused grouped-linear + unsqueeze (G*Fin -> C*K), then SiLU.
    u = jnp.dot(s.astype(mxu), wfused_ref[...], preferred_element_type=f32)  # [TB, CK]
    u = _silu(u + bfused_ref[...], approx_silu)

    o_ref[...] = u.astype(o_ref.dtype)


def f_fullband_block(x, params, *, block_bt=512, fast=False):
    """x: [BT, C, Fin] -> [BT, C, K].

    block_bt : rows per grid step (capped so the grid has >= 2 steps when BT allows).
    fast     : bf16 MXU operands (f32 accumulation) + approx-reciprocal SiLU.
               Default False = exact f32 module semantics.
    """
    BT, C, Fin = x.shape
    G, K, H = params["weight"].shape
    assert H == Fin
    CF, GF, GK, CK = C * Fin, G * Fin, G * K, C * K
    f32 = jnp.float32
    mxu_dtype = jnp.bfloat16 if fast else f32

    gamma = params["ln_gamma"].reshape(C).astype(f32)
    beta = params["ln_beta"].reshape(C).astype(f32)
    w_sq = params["w_sq"].astype(f32)                     # [G, C]
    b_sq = params["b_sq"].reshape(G).astype(f32)
    w_un = params["w_un"].astype(f32)                     # [C, G]
    b_un = params["b_un"].reshape(C).astype(f32)
    weight = params["weight"].astype(f32)                 # [G, K, Fin]
    bias_p = params["bias"].astype(f32)                   # [G, K]

    eye_f = jnp.eye(Fin, dtype=f32)
    eye_k = jnp.eye(K, dtype=f32)

    # ---- pre-expanded, pre-folded constants (built once in the wrapper) ----
    # reduce-over-C comb with 1/C folded in: [CF, Fin]
    a_red = jnp.tile(eye_f, (C, 1)) * (1.0 / C)
    # squeeze weight with gamma folded, expanded so (c,f) -> (g,f) keeps f fixed
    wsq_g = jnp.kron((w_sq * gamma[None, :]).T, eye_f).astype(mxu_dtype)       # [CF, GF]
    # squeeze bias with beta pushed through the conv: [1, GF]
    bsq_g = jnp.repeat(w_sq @ beta + b_sq, Fin)[None, :]
    # frequency tile-back comb at GF width + per-group mean-correction scale
    b_til_g = jnp.tile(eye_f, (1, G))                                          # [Fin, GF]
    mcorr = b_til_g * jnp.repeat(w_sq @ gamma, Fin)[None, :]                   # [Fin, GF]
    # fused grouped-linear (block-diagonal) + unsqueeze: [GF, CK] and [1, CK]
    w_blk = jnp.einsum("ab,bkh->ahbk", jnp.eye(G, dtype=f32), weight).reshape(GF, GK)
    wun_exp = jnp.kron(w_un.T, eye_k)                                          # [GK, CK]
    w_fused = (w_blk @ wun_exp).astype(mxu_dtype)                              # [GF, CK]
    b_fused = bias_p.reshape(1, GK) @ wun_exp + jnp.repeat(b_un, K)[None, :]   # [1, CK]

    # ---- free reshape to a lane-dense [BT, C*Fin] slab, pad rows to the tile ----
    xf = x.reshape(BT, CF)
    tb = _pick_tile(BT, block_bt)
    btp = _round_up(BT, tb)
    if btp != BT:
        xf = jnp.pad(xf, ((0, btp - BT), (0, 0)))

    def const(shape):
        return pl.BlockSpec(shape, lambda i: (0, 0))

    out = pl.pallas_call(
        partial(_fullband_kernel, approx_silu=fast),
        out_shape=jax.ShapeDtypeStruct((btp, CK), x.dtype),
        grid=(btp // tb,),
        in_specs=[
            pl.BlockSpec((tb, CF), lambda i: (i, 0)),   # x block
            const((CF, Fin)),    # a_red      (1/C folded)
            const((CF, GF)),     # wsq_g      (gamma folded, comb-expanded)
            const((1, GF)),      # bsq_g      (beta folded)
            const((Fin, GF)),    # mcorr      (mean-correction comb)
            const((Fin, GF)),    # b_til_g    (rstd tile-back comb)
            const((GF, CK)),     # w_fused    (grouped linear + unsqueeze)
            const((1, CK)),      # b_fused
        ],
        out_specs=pl.BlockSpec((tb, CK), lambda i: (i, 0)),
        compiler_params=pltpu.CompilerParams(dimension_semantics=("parallel",)),
    )(xf, a_red, wsq_g, bsq_g, mcorr, b_til_g, w_fused, b_fused)

    return out[:BT].reshape(BT, C, K)


def reference(x, p):
    """Pure-JAX mirror of the PyTorch forward (inference, no dropout)."""
    xt = jnp.swapaxes(x, -1, 1)                              # [BT, Fin, C]
    mean = xt.mean(-1, keepdims=True)
    var = ((xt - mean) ** 2).mean(-1, keepdims=True)
    y = (xt - mean) / jnp.sqrt(var + 1e-5) * p["ln_gamma"][0] + p["ln_beta"][0]
    y = jnp.swapaxes(y, -1, 1)                               # [BT, C, Fin]
    s = jnp.einsum("gc,bcf->bgf", p["w_sq"], y) + p["b_sq"][0][None, :, None]
    s = jax.nn.silu(s)
    z = jnp.einsum("bgh,gkh->bgk", s, p["weight"]) + p["bias"][None]
    u = jnp.einsum("dg,bgk->bdk", p["w_un"], z) + p["b_un"][0][None, :, None]
    return jax.nn.silu(u)


def make_params(key, in_features, out_features, dim_hidden, num_groups):
    ks = jax.random.split(key, 8)
    bound_w = 1.0 / jnp.sqrt(in_features)      # ~kaiming_uniform(a=sqrt(5)) bound
    bound_sq = 1.0 / jnp.sqrt(dim_hidden)
    bound_un = 1.0 / jnp.sqrt(num_groups)
    f32 = jnp.float32
    return {
        "weight":   jax.random.uniform(ks[0], (num_groups, out_features, in_features),
                                       f32, -bound_w, bound_w),
        "bias":     jax.random.uniform(ks[1], (num_groups, out_features), f32,
                                       -bound_w, bound_w),
        "w_sq":     jax.random.uniform(ks[2], (num_groups, dim_hidden), f32,
                                       -bound_sq, bound_sq),
        "b_sq":     jax.random.uniform(ks[3], (1, num_groups), f32, -bound_sq, bound_sq),
        "w_un":     jax.random.uniform(ks[4], (dim_hidden, num_groups), f32,
                                       -bound_un, bound_un),
        "b_un":     jax.random.uniform(ks[5], (1, dim_hidden), f32, -bound_un, bound_un),
        # non-trivial LN affine so the gamma/beta folding is actually exercised
        "ln_gamma": jax.random.uniform(ks[6], (1, dim_hidden), f32, 0.5, 1.5),
        "ln_beta":  jax.random.uniform(ks[7], (1, dim_hidden), f32, -0.1, 0.1),
    }


if __name__ == "__main__":
    # Small, forward-consistent shapes.
    BT = 20              # batch * time (exercises padding + multi-step grid)
    dim_hidden = 32      # channel dim (LayerNorm / conv channels)
    in_features = 16     # frequency bins into the grouped linear
    out_features = 16
    num_groups = 8

    key = jax.random.PRNGKey(0)
    kx, kp = jax.random.split(key)
    x = jax.random.normal(kx, (BT, dim_hidden, in_features), jnp.float32)
    params = make_params(kp, in_features, out_features, dim_hidden, num_groups)

    ref = reference(x, params)

    # Exact f32 path: tiny block (multi-step grid + row padding) and default block
    # (which is capped so the grid still has 2 steps -> v7x dual-core path).
    out_small = jax.block_until_ready(f_fullband_block(x, params, block_bt=8))
    out_big = jax.block_until_ready(f_fullband_block(x, params))
    assert out_small.shape == (BT, dim_hidden, out_features)
    assert out_big.shape == (BT, dim_hidden, out_features)
    assert jnp.allclose(out_small, ref, atol=5e-5, rtol=5e-5), "mismatch (small block)"
    assert jnp.allclose(out_big, ref, atol=5e-5, rtol=5e-5), "mismatch (large block)"

    # Fast path (bf16 MXU operands + approx-reciprocal SiLU) -> loose tolerance.
    out_fast = jax.block_until_ready(f_fullband_block(x, params, fast=True))
    assert out_fast.shape == (BT, dim_hidden, out_features)
    assert jnp.allclose(out_fast, ref, atol=1e-1, rtol=1e-1), "mismatch (fast/bf16)"

    print("KERNEL_OK")
</pallas_src>

<mosaic_0001>
module attributes {stable_mosaic.version = 11 : i64} {
  func.func @_fullband_kernel(%arg0: i32, %arg1: memref<8x512xf32, #tpu.memory_space<vmem>>, %arg2: memref<512x16xf32, #tpu.memory_space<vmem>>, %arg3: memref<512x128xf32, #tpu.memory_space<vmem>>, %arg4: memref<1x128xf32, #tpu.memory_space<vmem>>, %arg5: memref<16x128xf32, #tpu.memory_space<vmem>>, %arg6: memref<16x128xf32, #tpu.memory_space<vmem>>, %arg7: memref<128x512xf32, #tpu.memory_space<vmem>>, %arg8: memref<1x512xf32, #tpu.memory_space<vmem>>, %arg9: memref<8x512xf32, #tpu.memory_space<vmem>>) attributes {dimension_semantics = [#tpu.dimension_semantics<parallel>], iteration_bounds = array<i64: 3>, scalar_prefetch = 0 : i64, scratch_operands = 0 : i64, tpu.core_type = #tpu.core_type<tc>, window_params = [{transform_indices = @transform_0, window_bounds = array<i64: 8, 512>}, {pipeline_mode = #tpu.pipeline_mode<synchronous>, transform_indices = @transform_1, window_bounds = array<i64: 512, 16>}, {pipeline_mode = #tpu.pipeline_mode<synchronous>, transform_indices = @transform_2, window_bounds = array<i64: 512, 128>}, {pipeline_mode = #tpu.pipeline_mode<synchronous>, transform_indices = @transform_3, window_bounds = array<i64: 1, 128>}, {pipeline_mode = #tpu.pipeline_mode<synchronous>, transform_indices = @transform_4, window_bounds = array<i64: 16, 128>}, {pipeline_mode = #tpu.pipeline_mode<synchronous>, transform_indices = @transform_5, window_bounds = array<i64: 16, 128>}, {pipeline_mode = #tpu.pipeline_mode<synchronous>, transform_indices = @transform_6, window_bounds = array<i64: 128, 512>}, {pipeline_mode = #tpu.pipeline_mode<synchronous>, transform_indices = @transform_7, window_bounds = array<i64: 1, 512>}, {transform_indices = @transform_8, window_bounds = array<i64: 8, 512>}]} {
    %c0 = arith.constant 0 : index
    %c0_0 = arith.constant 0 : index
    %0 = vector.load %arg1[%c0, %c0_0] : memref<8x512xf32, #tpu.memory_space<vmem>>, vector<8x512xf32>
    %c0_1 = arith.constant 0 : index
    %c0_2 = arith.constant 0 : index
    %1 = vector.load %arg2[%c0_1, %c0_2] : memref<512x16xf32, #tpu.memory_space<vmem>>, vector<512x16xf32>
    %cst = arith.constant dense<0.000000e+00> : vector<8x16xf32>
    %2 = tpu.matmul %0, %1, %cst {dimension_numbers = #tpu.dot_dimension_numbers<[1], [0], [0], [1], [0, 0, 1, 1], [], []>} : vector<8x512xf32>, vector<512x16xf32>, vector<8x16xf32> -> vector<8x16xf32>
    %3 = arith.mulf %0, %0 : vector<8x512xf32>
    %cst_3 = arith.constant dense<0.000000e+00> : vector<8x16xf32>
    %4 = tpu.matmul %3, %1, %cst_3 {dimension_numbers = #tpu.dot_dimension_numbers<[1], [0], [0], [1], [0, 0, 1, 1], [], []>} : vector<8x512xf32>, vector<512x16xf32>, vector<8x16xf32> -> vector<8x16xf32>
    %5 = arith.mulf %2, %2 : vector<8x16xf32>
    %6 = arith.subf %4, %5 : vector<8x16xf32>
    %cst_4 = arith.constant 9.99999974E-6 : f32
    %7 = vector.broadcast %cst_4 : f32 to vector<8x16xf32>
    %8 = arith.addf %6, %7 : vector<8x16xf32>
    %9 = math.rsqrt %8 : vector<8x16xf32>
    %c0_5 = arith.constant 0 : index
    %c0_6 = arith.constant 0 : index
    %10 = vector.load %arg3[%c0_5, %c0_6] : memref<512x128xf32, #tpu.memory_space<vmem>>, vector<512x128xf32>
    %cst_7 = arith.constant dense<0.000000e+00> : vector<8x128xf32>
    %11 = tpu.matmul %0, %10, %cst_7 {dimension_numbers = #tpu.dot_dimension_numbers<[1], [0], [0], [1], [0, 0, 1, 1], [], []>} : vector<8x512xf32>, vector<512x128xf32>, vector<8x128xf32> -> vector<8x128xf32>
    %c0_8 = arith.constant 0 : index
    %c0_9 = arith.constant 0 : index
    %12 = vector.load %arg5[%c0_8, %c0_9] : memref<16x128xf32, #tpu.memory_space<vmem>>, vector<16x128xf32>
    %cst_10 = arith.constant dense<0.000000e+00> : vector<8x128xf32>
    %13 = tpu.matmul %2, %12, %cst_10 {dimension_numbers = #tpu.dot_dimension_numbers<[1], [0], [0], [1], [0, 0, 1, 1], [], []>} : vector<8x16xf32>, vector<16x128xf32>, vector<8x128xf32> -> vector<8x128xf32>
    %c0_11 = arith.constant 0 : index
    %c0_12 = arith.constant 0 : index
    %14 = vector.load %arg6[%c0_11, %c0_12] : memref<16x128xf32, #tpu.memory_space<vmem>>, vector<16x128xf32>
    %cst_13 = arith.constant dense<0.000000e+00> : vector<8x128xf32>
    %15 = tpu.matmul %9, %14, %cst_13 {dimension_numbers = #tpu.dot_dimension_numbers<[1], [0], [0], [1], [0, 0, 1, 1], [], []>} : vector<8x16xf32>, vector<16x128xf32>, vector<8x128xf32> -> vector<8x128xf32>
    %16 = arith.subf %11, %13 : vector<8x128xf32>
    %17 = arith.mulf %16, %15 : vector<8x128xf32>
    %c0_14 = arith.constant 0 : index
    %c0_15 = arith.constant 0 : index
    %18 = vector.load %arg4[%c0_14, %c0_15] : memref<1x128xf32, #tpu.memory_space<vmem>>, vector<1x128xf32>
    %19 = vector.broadcast %18 : vector<1x128xf32> to vector<8x128xf32>
    %20 = arith.addf %17, %19 : vector<8x128xf32>
    %21 = arith.negf %20 : vector<8x128xf32>
    %22 = math.exp %21 : vector<8x128xf32>
    %cst_16 = arith.constant 1.000000e+00 : f32
    %23 = vector.broadcast %cst_16 : f32 to vector<8x128xf32>
    %24 = arith.addf %23, %22 : vector<8x128xf32>
    %25 = arith.divf %23, %24 : vector<8x128xf32>
    %26 = arith.mulf %20, %25 : vector<8x128xf32>
    %c0_17 = arith.constant 0 : index
    %c0_18 = arith.constant 0 : index
    %27 = vector.load %arg7[%c0_17, %c0_18] : memref<128x512xf32, #tpu.memory_space<vmem>>, vector<128x512xf32>
    %cst_19 = arith.constant dense<0.000000e+00> : vector<8x512xf32>
    %28 = tpu.matmul %26, %27, %cst_19 {dimension_numbers = #tpu.dot_dimension_numbers<[1], [0], [0], [1], [0, 0, 1, 1], [], []>} : vector<8x128xf32>, vector<128x512xf32>, vector<8x512xf32> -> vector<8x512xf32>
    %c0_20 = arith.constant 0 : index
    %c0_21 = arith.constant 0 : index
    %29 = vector.load %arg8[%c0_20, %c0_21] : memref<1x512xf32, #tpu.memory_space<vmem>>, vector<1x512xf32>
    %30 = vector.broadcast %29 : vector<1x512xf32> to vector<8x512xf32>
    %31 = arith.addf %28, %30 : vector<8x512xf32>
    %32 = arith.negf %31 : vector<8x512xf32>
    %33 = math.exp %32 : vector<8x512xf32>
    %cst_22 = arith.constant 1.000000e+00 : f32
    %34 = vector.broadcast %cst_22 : f32 to vector<8x512xf32>
    %35 = arith.addf %34, %33 : vector<8x512xf32>
    %36 = arith.divf %34, %35 : vector<8x512xf32>
    %37 = arith.mulf %31, %36 : vector<8x512xf32>
    %c0_23 = arith.constant 0 : index
    %c0_24 = arith.constant 0 : index
    %38 = vector.load %arg9[%c0_23, %c0_24] : memref<8x512xf32, #tpu.memory_space<vmem>>, vector<8x512xf32>
    tpu.vector_store %arg9[%c0_23, %c0_24], %37 {strides = array<i32>} : memref<8x512xf32, #tpu.memory_space<vmem>>, vector<8x512xf32>,
    return
  }
  func.func @transform_0(%arg0: i32) -> (i32, i32) {
    %c0_i32 = arith.constant 0 : i32
    %c0_i32_0 = arith.constant 0 : i32
    return %arg0, %c0_i32 : i32, i32
  }
  func.func @transform_1(%arg0: i32) -> (i32, i32) {
    %c0_i32 = arith.constant 0 : i32
    %c0_i32_0 = arith.constant 0 : i32
    %c0_i32_1 = arith.constant 0 : i32
    return %c0_i32, %c0_i32_0 : i32, i32
  }
  func.func @transform_2(%arg0: i32) -> (i32, i32) {
    %c0_i32 = arith.constant 0 : i32
    %c0_i32_0 = arith.constant 0 : i32
    %c0_i32_1 = arith.constant 0 : i32
    return %c0_i32, %c0_i32_0 : i32, i32
  }
  func.func @transform_3(%arg0: i32) -> (i32, i32) {
    %c0_i32 = arith.constant 0 : i32
    %c0_i32_0 = arith.constant 0 : i32
    %c0_i32_1 = arith.constant 0 : i32
    return %c0_i32, %c0_i32_0 : i32, i32
  }
  func.func @transform_4(%arg0: i32) -> (i32, i32) {
    %c0_i32 = arith.constant 0 : i32
    %c0_i32_0 = arith.constant 0 : i32
    %c0_i32_1 = arith.constant 0 : i32
    return %c0_i32, %c0_i32_0 : i32, i32
  }
  func.func @transform_5(%arg0: i32) -> (i32, i32) {
    %c0_i32 = arith.constant 0 : i32
    %c0_i32_0 = arith.constant 0 : i32
    %c0_i32_1 = arith.constant 0 : i32
    return %c0_i32, %c0_i32_0 : i32, i32
  }
  func.func @transform_6(%arg0: i32) -> (i32, i32) {
    %c0_i32 = arith.constant 0 : i32
    %c0_i32_0 = arith.constant 0 : i32
    %c0_i32_1 = arith.constant 0 : i32
    return %c0_i32, %c0_i32_0 : i32, i32
  }
  func.func @transform_7(%arg0: i32) -> (i32, i32) {
    %c0_i32 = arith.constant 0 : i32
    %c0_i32_0 = arith.constant 0 : i32
    %c0_i32_1 = arith.constant 0 : i32
    return %c0_i32, %c0_i32_0 : i32, i32
  }
  func.func @transform_8(%arg0: i32) -> (i32, i32) {
    %c0_i32 = arith.constant 0 : i32
    %c0_i32_0 = arith.constant 0 : i32
    return %arg0, %c0_i32 : i32, i32
  }
}

</mosaic_0001>

<llo_original>
// kernel: tpu_custom_call.1
$region0: #{tpu_custom_call.1}
  #allocation0 [shape = 'u32[]', space=smem, size = 0x4, offset = 0x4, fixed_abs, tag = 'smem constant byte address 0x4 - core index']
  #allocation1 [shape = 'u32[72,128]{1,0:T(1,128)}', space=vmem, size = 0x9000, scoped, tag = 'internal scratch']
  %s0 = inlined_call_operand.hbm [shape: f32[24,512], index: 0, kind: input, shape index: {}]
  %s1 = inlined_call_operand.vmem [shape: f32[512,16], index: 1, kind: input, shape index: {}]
  %s2 = inlined_call_operand.vmem [shape: f32[512,128], index: 2, kind: input, shape index: {}]
  %s3 = inlined_call_operand.vmem [shape: f32[1,128], index: 3, kind: input, shape index: {}]
  %s4 = inlined_call_operand.vmem [shape: f32[16,128], index: 4, kind: input, shape index: {}]
  %s5 = inlined_call_operand.vmem [shape: f32[16,128], index: 5, kind: input, shape index: {}]
  %s6 = inlined_call_operand.hbm [shape: f32[128,512], index: 6, kind: input, shape index: {}]
  %s7 = inlined_call_operand.vmem [shape: f32[1,512], index: 7, kind: input, shape index: {}]
  %s8 = inlined_call_operand.hbm [shape: f32[24,512], index: 8, kind: output, shape index: {}]
  %s9 = sld [smem:[#allocation0]]
  $region73: #{tpu_custom_call.1} parent=0
    _
  %s11 = ssub.s32 1, %s9
  %s12 = scalar_select 0, %s11, %s9
  $region1: #{tpu_custom_call.1} parent=0
    #allocation2 [shape = 'u8[32768]{0}', space=vmem, size = 0x8000, scoped, tag = 'input window, operand 0']
    #allocation3 [shape = 's32[2]{0}', space=sflag, size = 0x8, scoped, tag = 'scoped memory for tpu_custom_call.1']
    #allocation4 [shape = 's32[2]{0}', space=sflag, size = 0x8, scoped, tag = 'scoped memory for tpu_custom_call.1']
    #allocation5 [shape = 'u8[262144]{0}', space=vmem, size = 0x40000, scoped, tag = 'input window, operand 6, single buffered']
    #allocation6 [shape = 's32[1]{0}', space=sflag, size = 0x4, scoped, tag = 'scoped memory for tpu_custom_call.1']
    #allocation7 [shape = 'u8[32768]{0}', space=vmem, size = 0x8000, scoped, tag = 'output window, operand 0']
    %13 = vsyncpa [#allocation3], 0
    %s14 = scalar_lea.sflag [#allocation3], 1
    %15 = vsyncpa %s14, 0
    %16 = vsyncpa [#allocation6], 0
    %17 = vsyncpa [#allocation4], 0
    %s18 = scalar_lea.sflag [#allocation4], 1
    %19 = vsyncpa %s18, 0
    loop: start=0, step=1, limit=5
    $region2: #{tpu_custom_call.1} parent=1 // loop_pre_header
      _
    $region3: #{tpu_custom_call.1} parent=1 // loop_header
      %s21 = sphi 0, %s25
      %p22 = scmp.ge.s32.totalorder %s21, 5
      %s31 = sphi 0, %s33
      %s34 = sphi 0, %s31
      %s35 = sphi 0, %s34
      %s51 = sphi 0, %s35
      %s55 = sphi 0, %s55
      %s57 = sphi 0, %s55
      %s58 = sphi 0, %s57
      %s72 = sphi 0, %s58
      %s76 = sphi 0, %s76
      %s78 = sphi 0, %s76
      %s79 = sphi 0, %s78
      %s93 = sphi 0, %s79
      %s97 = sphi 0, %s97
      %s99 = sphi 0, %s97
      %s100 = sphi 0, %s99
      %s114 = sphi 0, %s100
      %s118 = sphi 0, %s118
      %s120 = sphi 0, %s118
      %s121 = sphi 0, %s120
      %s135 = sphi 0, %s121
      %s139 = sphi 0, %s139
      %s141 = sphi 0, %s139
      %s142 = sphi 0, %s141
      %s156 = sphi 0, %s142
      %s160 = sphi 0, %s160
      %s162 = sphi 0, %s160
      %s163 = sphi 0, %s162
      %s177 = sphi 0, %s163
      %s181 = sphi 0, %s181
      %s183 = sphi 0, %s181
      %s184 = sphi 0, %s183
      %s198 = sphi 0, %s184
      %s204 = sphi 0, %s206
      %s207 = sphi 0, %s204
      %s208 = sphi 0, %s207
      %s224 = sphi 0, %s208
    $region4: #{tpu_custom_call.1} parent=1 // loop_header_branch
      %24 = sbr.rel (%p22) target = $region8
    $region5: #{tpu_custom_call.1} parent=1 // loop_body
      %s26 = ssub.s32 %s21, 1
      %s27 = ssub.s32 %s21, 2
      %s28 = sadd.s32 %s21, 1
      %s29 = ssub.s32 %s21, %s28
      %p30 = scmp.eq.s32.totalorder %s29, 0
      %s32 = sadd.s32 %s31, 1
      %s33 = scalar_select %p30, %s31, %s32
      %p36 = pneg %p30
      %p37 = scmp.eq.s32.totalorder %s21, 2
      %p38 = por %p36, %p37
      %p39 = scmp.ne.s32.totalorder %s31, %s34
      %p40 = scmp.eq.s32.totalorder %s21, 0
      %p41 = por %p39, %p40
      %p42 = scmp.ne.s32.totalorder %s31, %s34
      %p43 = scmp.eq.s32.totalorder %s26, 2
      %p44 = por %p42, %p43
      %p45 = scmp.ne.s32.totalorder %s34, %s35
      %p46 = scmp.eq.s32.totalorder %s26, 0
      %p47 = por %p45, %p46
      %p48 = scmp.ne.s32.totalorder %s34, %s35
      %p49 = scmp.eq.s32.totalorder %s27, 2
      %p50 = por %p48, %p49
      %p52 = scmp.ne.s32.totalorder %s35, %s51
      %p53 = scmp.eq.s32.totalorder %s27, 0
      %p54 = por %p52, %p53
      %s56 = sadd.s32 %s55, 1
      %p59 = scmp.eq.s32.totalorder %s21, 2
      %p60 = scmp.ne.s32.totalorder %s55, %s57
      %p61 = scmp.eq.s32.totalorder %s21, 0
      %p62 = por %p60, %p61
      %p63 = scmp.ne.s32.totalorder %s55, %s57
      %p64 = scmp.eq.s32.totalorder %s26, 2
      %p65 = por %p63, %p64
      %p66 = scmp.ne.s32.totalorder %s57, %s58
      %p67 = scmp.eq.s32.totalorder %s26, 0
      %p68 = por %p66, %p67
      %p69 = scmp.ne.s32.totalorder %s57, %s58
      %p70 = scmp.eq.s32.totalorder %s27, 2
      %p71 = por %p69, %p70
      %p73 = scmp.ne.s32.totalorder %s58, %s72
      %p74 = scmp.eq.s32.totalorder %s27, 0
      %p75 = por %p73, %p74
      %s77 = sadd.s32 %s76, 1
      %p80 = scmp.eq.s32.totalorder %s21, 2
      %p81 = scmp.ne.s32.totalorder %s76, %s78
      %p82 = scmp.eq.s32.totalorder %s21, 0
      %p83 = por %p81, %p82
      %p84 = scmp.ne.s32.totalorder %s76, %s78
      %p85 = scmp.eq.s32.totalorder %s26, 2
      %p86 = por %p84, %p85
      %p87 = scmp.ne.s32.totalorder %s78, %s79
      %p88 = scmp.eq.s32.totalorder %s26, 0
      %p89 = por %p87, %p88
      %p90 = scmp.ne.s32.totalorder %s78, %s79
      %p91 = scmp.eq.s32.totalorder %s27, 2
      %p92 = por %p90, %p91
      %p94 = scmp.ne.s32.totalorder %s79, %s93
      %p95 = scmp.eq.s32.totalorder %s27, 0
      %p96 = por %p94, %p95
      %s98 = sadd.s32 %s97, 1
      %p101 = scmp.eq.s32.totalorder %s21, 2
      %p102 = scmp.ne.s32.totalorder %s97, %s99
      %p103 = scmp.eq.s32.totalorder %s21, 0
      %p104 = por %p102, %p103
      %p105 = scmp.ne.s32.totalorder %s97, %s99
      %p106 = scmp.eq.s32.totalorder %s26, 2
      %p107 = por %p105, %p106
      %p108 = scmp.ne.s32.totalorder %s99, %s100
      %p109 = scmp.eq.s32.totalorder %s26, 0
      %p110 = por %p108, %p109
      %p111 = scmp.ne.s32.totalorder %s99, %s100
      %p112 = scmp.eq.s32.totalorder %s27, 2
      %p113 = por %p111, %p112
      %p115 = scmp.ne.s32.totalorder %s100, %s114
      %p116 = scmp.eq.s32.totalorder %s27, 0
      %p117 = por %p115, %p116
      %s119 = sadd.s32 %s118, 1
      %p122 = scmp.eq.s32.totalorder %s21, 2
      %p123 = scmp.ne.s32.totalorder %s118, %s120
      %p124 = scmp.eq.s32.totalorder %s21, 0
      %p125 = por %p123, %p124
      %p126 = scmp.ne.s32.totalorder %s118, %s120
      %p127 = scmp.eq.s32.totalorder %s26, 2
      %p128 = por %p126, %p127
      %p129 = scmp.ne.s32.totalorder %s120, %s121
      %p130 = scmp.eq.s32.totalorder %s26, 0
      %p131 = por %p129, %p130
      %p132 = scmp.ne.s32.totalorder %s120, %s121
      %p133 = scmp.eq.s32.totalorder %s27, 2
      %p134 = por %p132, %p133
      %p136 = scmp.ne.s32.totalorder %s121, %s135
      %p137 = scmp.eq.s32.totalorder %s27, 0
      %p138 = por %p136, %p137
      %s140 = sadd.s32 %s139, 1
      %p143 = scmp.eq.s32.totalorder %s21, 2
      %p144 = scmp.ne.s32.totalorder %s139, %s141
      %p145 = scmp.eq.s32.totalorder %s21, 0
      %p146 = por %p144, %p145
      %p147 = scmp.ne.s32.totalorder %s139, %s141
      %p148 = scmp.eq.s32.totalorder %s26, 2
      %p149 = por %p147, %p148
      %p150 = scmp.ne.s32.totalorder %s141, %s142
      %p151 = scmp.eq.s32.totalorder %s26, 0
      %p152 = por %p150, %p151
      %p153 = scmp.ne.s32.totalorder %s141, %s142
      %p154 = scmp.eq.s32.totalorder %s27, 2
      %p155 = por %p153, %p154
      %p157 = scmp.ne.s32.totalorder %s142, %s156
      %p158 = scmp.eq.s32.totalorder %s27, 0
      %p159 = por %p157, %p158
      %s161 = sadd.s32 %s160, 1
      %p164 = scmp.eq.s32.totalorder %s21, 2
      %p165 = scmp.ne.s32.totalorder %s160, %s162
      %p166 = scmp.eq.s32.totalorder %s21, 0
      %p167 = por %p165, %p166
      %p168 = scmp.ne.s32.totalorder %s160, %s162
      %p169 = scmp.eq.s32.totalorder %s26, 2
      %p170 = por %p168, %p169
      %p171 = scmp.ne.s32.totalorder %s162, %s163
      %p172 = scmp.eq.s32.totalorder %s26, 0
      %p173 = por %p171, %p172
      %p174 = scmp.ne.s32.totalorder %s162, %s163
      %p175 = scmp.eq.s32.totalorder %s27, 2
      %p176 = por %p174, %p175
      %p178 = scmp.ne.s32.totalorder %s163, %s177
      %p179 = scmp.eq.s32.totalorder %s27, 0
      %p180 = por %p178, %p179
      %s182 = sadd.s32 %s181, 1
      %p185 = scmp.eq.s32.totalorder %s21, 2
      %p186 = scmp.ne.s32.totalorder %s181, %s183
      %p187 = scmp.eq.s32.totalorder %s21, 0
      %p188 = por %p186, %p187
      %p189 = scmp.ne.s32.totalorder %s181, %s183
      %p190 = scmp.eq.s32.totalorder %s26, 2
      %p191 = por %p189, %p190
      %p192 = scmp.ne.s32.totalorder %s183, %s184
      %p193 = scmp.eq.s32.totalorder %s26, 0
      %p194 = por %p192, %p193
      %p195 = scmp.ne.s32.totalorder %s183, %s184
      %p196 = scmp.eq.s32.totalorder %s27, 2
      %p197 = por %p195, %p196
      %p199 = scmp.ne.s32.totalorder %s184, %s198
      %p200 = scmp.eq.s32.totalorder %s27, 0
      %p201 = por %p199, %p200
      %s202 = ssub.s32 %s21, %s28
      %p203 = scmp.eq.s32.totalorder %s202, 0
      %s205 = sadd.s32 %s204, 1
      %s206 = scalar_select %p203, %s204, %s205
      %p209 = pneg %p203
      %p210 = scmp.eq.s32.totalorder %s21, 2
      %p211 = por %p209, %p210
      %p212 = scmp.ne.s32.totalorder %s204, %s207
      %p213 = scmp.eq.s32.totalorder %s21, 0
      %p214 = por %p212, %p213
      %p215 = scmp.ne.s32.totalorder %s204, %s207
      %p216 = scmp.eq.s32.totalorder %s26, 2
      %p217 = por %p215, %p216
      %p218 = scmp.ne.s32.totalorder %s207, %s208
      %p219 = scmp.eq.s32.totalorder %s26, 0
      %p220 = por %p218, %p219
      %p221 = scmp.ne.s32.totalorder %s207, %s208
      %p222 = scmp.eq.s32.totalorder %s27, 2
      %p223 = por %p221, %p222
      %p225 = scmp.ne.s32.totalorder %s208, %s224
      %p226 = scmp.eq.s32.totalorder %s27, 0
      %p227 = por %p225, %p226
      %p228 = scmp.le.s32.totalorder 1, %s21
      %p229 = scmp.lt.s32.totalorder %s21, 4
      %p230 = pnand %p228, %p229
      %p231 = pneg %p230
      // Predicated region
      $region9: #{tpu_custom_call.1} parent=5 // pred_check
        _
      $region10: #{tpu_custom_call.1} parent=5 // pred_check_branch
        %233 = sbr.rel (%p230) target = $region12
      $region11: #{tpu_custom_call.1} parent=5 // pred_region
        %s234 = ssub.s32 %s21, 1
        // Predicated region
        $region13: #{tpu_custom_call.1} parent=11 // pred_check
          %p235 = pneg %p68
        $region14: #{tpu_custom_call.1} parent=11 // pred_check_branch
          %237 = sbr.rel (%p235) target = $region16
        $region15: #{tpu_custom_call.1} parent=11 // pred_region
          _
        $region16: #{tpu_custom_call.1} parent=11 // pred_fallthru
          _
        // Predicated region
        $region17: #{tpu_custom_call.1} parent=11 // pred_check
          %p238 = pneg %p89
        $region18: #{tpu_custom_call.1} parent=11 // pred_check_branch
          %240 = sbr.rel (%p238) target = $region20
        $region19: #{tpu_custom_call.1} parent=11 // pred_region
          _
        $region20: #{tpu_custom_call.1} parent=11 // pred_fallthru
          _
        // Predicated region
        $region21: #{tpu_custom_call.1} parent=11 // pred_check
          %p241 = pneg %p110
        $region22: #{tpu_custom_call.1} parent=11 // pred_check_branch
          %243 = sbr.rel (%p241) target = $region24
        $region23: #{tpu_custom_call.1} parent=11 // pred_region
          _
        $region24: #{tpu_custom_call.1} parent=11 // pred_fallthru
          _
        // Predicated region
        $region25: #{tpu_custom_call.1} parent=11 // pred_check
          %p244 = pneg %p131
        $region26: #{tpu_custom_call.1} parent=11 // pred_check_branch
          %246 = sbr.rel (%p244) target = $region28
        $region27: #{tpu_custom_call.1} parent=11 // pred_region
          _
        $region28: #{tpu_custom_call.1} parent=11 // pred_fallthru
          _
        // Predicated region
        $region29: #{tpu_custom_call.1} parent=11 // pred_check
          %p247 = pneg %p152
        $region30: #{tpu_custom_call.1} parent=11 // pred_check_branch
          %249 = sbr.rel (%p247) target = $region32
        $region31: #{tpu_custom_call.1} parent=11 // pred_region
          _
        $region32: #{tpu_custom_call.1} parent=11 // pred_fallthru
          _
        // Predicated region
        $region33: #{tpu_custom_call.1} parent=11 // pred_check
          %p250 = pneg %p173
        $region34: #{tpu_custom_call.1} parent=11 // pred_check_branch
          %252 = sbr.rel (%p250) target = $region36
        $region35: #{tpu_custom_call.1} parent=11 // pred_region
          %254 = vsyncadd [#allocation6], 0
          %s255 = sshll.u32 %s6, 4
          %s256 = int_to_ptr.hbm [resolvable:$true] %s255
          %s257 = sshll.u32 [#allocation5], 4
          %s258 = int_to_ptr.vmem [resolvable:$true] %s257
          %263 = dma.hbm_to_vmem [thread:$0]  %s256, 8192, %s258, [#allocation6], 512, 512, 32
        $region36: #{tpu_custom_call.1} parent=11 // pred_fallthru
          _
        // Predicated region
        $region37: #{tpu_custom_call.1} parent=11 // pred_check
          %p264 = pneg %p194
        $region38: #{tpu_custom_call.1} parent=11 // pred_check_branch
          %266 = sbr.rel (%p264) target = $region40
        $region39: #{tpu_custom_call.1} parent=11 // pred_region
          _
        $region40: #{tpu_custom_call.1} parent=11 // pred_fallthru
          _
      $region12: #{tpu_custom_call.1} parent=5 // pred_fallthru
        _
      %p267 = scmp.lt.s32.totalorder %s21, 3
      // Predicated region
      $region41: #{tpu_custom_call.1} parent=5 // pred_check
        %p268 = pneg %p267
      $region42: #{tpu_custom_call.1} parent=5 // pred_check_branch
        %270 = sbr.rel (%p268) target = $region44
      $region43: #{tpu_custom_call.1} parent=5 // pred_region
        // Predicated region
        $region45: #{tpu_custom_call.1} parent=43 // pred_check
          %p271 = pneg %p41
        $region46: #{tpu_custom_call.1} parent=43 // pred_check_branch
          %273 = sbr.rel (%p271) target = $region48
        $region47: #{tpu_custom_call.1} parent=43 // pred_region
          %s274 = sand.u32 %s31, 1
          %s275 = scalar_lea.sflag [#allocation3], %s274
          %s276 = sand.u32 %s31, 1
          %s277 = smul.addr %s276, 32
          %s278 = scalar_lea.vmem [#allocation2], %s277
          %280 = vsyncadd %s275, 0
          %s281 = smul.addr %s21, 4
          %s282 = smul.addr %s281, 8
          %s283 = scalar_lea.hbm %s0, %s282
          %s285 = sshll.u32 %s283, 4
          %s286 = int_to_ptr.hbm [resolvable:$true] %s285
          %s287 = sshll.u32 %s278, 4
          %s288 = int_to_ptr.vmem [resolvable:$true] %s287
          %290 = dma.hbm_to_vmem [thread:$0]  %s286, 512, %s288, %s275
        $region48: #{tpu_custom_call.1} parent=43 // pred_fallthru
          _
      $region44: #{tpu_custom_call.1} parent=5 // pred_fallthru
        _
      %p291 = scmp.le.s32.totalorder 1, %s21
      %p292 = scmp.lt.s32.totalorder %s21, 4
      %p293 = pnand %p291, %p292
      %p294 = pneg %p293
      // Predicated region
      $region49: #{tpu_custom_call.1} parent=5 // pred_check
        _
      $region50: #{tpu_custom_call.1} parent=5 // pred_check_branch
        %296 = sbr.rel (%p293) target = $region52
      $region51: #{tpu_custom_call.1} parent=5 // pred_region
        %s297 = ssub.s32 %s21, 1
        %s298 = sand.u32 %s34, 1
        %s299 = scalar_lea.sflag [#allocation3], %s298
        %s300 = sand.u32 %s34, 1
        %s301 = smul.addr %s300, 32
        %s302 = scalar_lea.vmem [#allocation2], %s301
        // Predicated region
        $region53: #{tpu_custom_call.1} parent=51 // pred_check
          %p303 = pneg %p47
        $region54: #{tpu_custom_call.1} parent=51 // pred_check_branch
          %305 = sbr.rel (%p303) target = $region56
        $region55: #{tpu_custom_call.1} parent=51 // pred_region
          %307 = dma.done %s299, 512
        $region56: #{tpu_custom_call.1} parent=51 // pred_fallthru
          _
        // Predicated region
        $region57: #{tpu_custom_call.1} parent=51 // pred_check
          %p308 = pneg %p173
        $region58: #{tpu_custom_call.1} parent=51 // pred_check_branch
          %310 = sbr.rel (%p308) target = $region60
        $region59: #{tpu_custom_call.1} parent=51 // pred_region
          %312 = dma.done [#allocation6], 8192
        $region60: #{tpu_custom_call.1} parent=51 // pred_fallthru
          _
        %s313 = sand.u32 %s34, 1
        %s314 = scalar_lea.sflag [#allocation3], %s313
        %s315 = sand.u32 %s34, 1
        %s316 = smul.addr %s315, 32
        %s317 = scalar_lea.vmem [#allocation2], %s316
        %p318 = pneg %p47
        %p319 = pneg %p44
        %p320 = pneg %p68
        %p321 = pneg %p65
        %p322 = pneg %p89
        %p323 = pneg %p86
        %p324 = pneg %p110
        %p325 = pneg %p107
        %p326 = pneg %p131
        %p327 = pneg %p128
        %p328 = pneg %p152
        %p329 = pneg %p149
        %p330 = pneg %p173
        %p331 = pneg %p170
        %p332 = pneg %p194
        %p333 = pneg %p191
        %p334 = pneg %p220
        %p335 = pneg %p217
        %s336 = sand.u32 %s207, 1
        %s337 = scalar_lea.sflag [#allocation4], %s336
        %s338 = sand.u32 %s207, 1
        %s339 = smul.addr %s338, 32
        %s340 = scalar_lea.vmem [#allocation7], %s339
        %v341 = vld [vmem:[%s302] sm:$0xff]
        %v342 = vld [vmem:[%s302 + $0x8] sm:$0xff]
        %v343 = vld [vmem:[%s302 + $0x10] sm:$0xff]
        %v344 = vld [vmem:[%s302 + $0x18] sm:$0xff]
        %v345 = vld [vmem:[%s1] sm:$0xff]
        %v346 = vld [vmem:[%s1 + $0x8] sm:$0xff]
        %v347 = vld [vmem:[%s1 + $0x10] sm:$0xff]
        %v348 = vld [vmem:[%s1 + $0x18] sm:$0xff]
        %v349 = vld [vmem:[%s1 + $0x20] sm:$0xff]
        %v350 = vld [vmem:[%s1 + $0x28] sm:$0xff]
        %v351 = vld [vmem:[%s1 + $0x30] sm:$0xff]
        %v352 = vld [vmem:[%s1 + $0x38] sm:$0xff]
        %v353 = vld [vmem:[%s1 + $0x40] sm:$0xff]
        %v354 = vld [vmem:[%s1 + $0x48] sm:$0xff]
        %v355 = vld [vmem:[%s1 + $0x50] sm:$0xff]
        %v356 = vld [vmem:[%s1 + $0x58] sm:$0xff]
        %v357 = vld [vmem:[%s1 + $0x60] sm:$0xff]
        %v358 = vld [vmem:[%s1 + $0x68] sm:$0xff]
        %v359 = vld [vmem:[%s1 + $0x70] sm:$0xff]
        %v360 = vld [vmem:[%s1 + $0x78] sm:$0xff]
        %v361 = vld [vmem:[%s1 + $0x80] sm:$0xff]
        %v362 = vld [vmem:[%s1 + $0x88] sm:$0xff]
        %v363 = vld [vmem:[%s1 + $0x90] sm:$0xff]
        %v364 = vld [vmem:[%s1 + $0x98] sm:$0xff]
        %v365 = vld [vmem:[%s1 + $0xa0] sm:$0xff]
        %v366 = vld [vmem:[%s1 + $0xa8] sm:$0xff]
        %v367 = vld [vmem:[%s1 + $0xb0] sm:$0xff]
        %v368 = vld [vmem:[%s1 + $0xb8] sm:$0xff]
        %v369 = vld [vmem:[%s1 + $0xc0] sm:$0xff]
        %v370 = vld [vmem:[%s1 + $0xc8] sm:$0xff]
        %v371 = vld [vmem:[%s1 + $0xd0] sm:$0xff]
        %v372 = vld [vmem:[%s1 + $0xd8] sm:$0xff]
        %v373 = vld [vmem:[%s1 + $0xe0] sm:$0xff]
        %v374 = vld [vmem:[%s1 + $0xe8] sm:$0xff]
        %v375 = vld [vmem:[%s1 + $0xf0] sm:$0xff]
        %v376 = vld [vmem:[%s1 + $0xf8] sm:$0xff]
        %v377 = vld [vmem:[%s1 + $0x100] sm:$0xff]
        %v378 = vld [vmem:[%s1 + $0x108] sm:$0xff]
        %v379 = vld [vmem:[%s1 + $0x110] sm:$0xff]
        %v380 = vld [vmem:[%s1 + $0x118] sm:$0xff]
        %v381 = vld [vmem:[%s1 + $0x120] sm:$0xff]
        %v382 = vld [vmem:[%s1 + $0x128] sm:$0xff]
        %v383 = vld [vmem:[%s1 + $0x130] sm:$0xff]
        %v384 = vld [vmem:[%s1 + $0x138] sm:$0xff]
        %v385 = vld [vmem:[%s1 + $0x140] sm:$0xff]
        %v386 = vld [vmem:[%s1 + $0x148] sm:$0xff]
        %v387 = vld [vmem:[%s1 + $0x150] sm:$0xff]
        %v388 = vld [vmem:[%s1 + $0x158] sm:$0xff]
        %v389 = vld [vmem:[%s1 + $0x160] sm:$0xff]
        %v390 = vld [vmem:[%s1 + $0x168] sm:$0xff]
        %v391 = vld [vmem:[%s1 + $0x170] sm:$0xff]
        %v392 = vld [vmem:[%s1 + $0x178] sm:$0xff]
        %v393 = vld [vmem:[%s1 + $0x180] sm:$0xff]
        %v394 = vld [vmem:[%s1 + $0x188] sm:$0xff]
        %v395 = vld [vmem:[%s1 + $0x190] sm:$0xff]
        %v396 = vld [vmem:[%s1 + $0x198] sm:$0xff]
        %v397 = vld [vmem:[%s1 + $0x1a0] sm:$0xff]
        %v398 = vld [vmem:[%s1 + $0x1a8] sm:$0xff]
        %v399 = vld [vmem:[%s1 + $0x1b0] sm:$0xff]
        %v400 = vld [vmem:[%s1 + $0x1b8] sm:$0xff]
        %v401 = vld [vmem:[%s1 + $0x1c0] sm:$0xff]
        %v402 = vld [vmem:[%s1 + $0x1c8] sm:$0xff]
        %v403 = vld [vmem:[%s1 + $0x1d0] sm:$0xff]
        %v404 = vld [vmem:[%s1 + $0x1d8] sm:$0xff]
        %v405 = vld [vmem:[%s1 + $0x1e0] sm:$0xff]
        %v406 = vld [vmem:[%s1 + $0x1e8] sm:$0xff]
        %v407 = vld [vmem:[%s1 + $0x1f0] sm:$0xff]
        %v408 = vld [vmem:[%s1 + $0x1f8] sm:$0xff]
        %409 = vmatpush.msra.mxu0 %v360
        %410 = vmatpush.msra.mxu0 %v359
        %411 = vmatpush.msra.mxu0 %v358
        %412 = vmatpush.msra.mxu0 %v357
        %413 = vmatpush.msra.mxu0 %v356
        %414 = vmatpush.msra.mxu0 %v355
        %415 = vmatpush.msra.mxu0 %v354
        %416 = vmatpush.msra.mxu0 %v353
        %417 = vmatpush.msra.mxu0 %v352
        %418 = vmatpush.msra.mxu0 %v351
        %419 = vmatpush.msra.mxu0 %v350
        %420 = vmatpush.msra.mxu0 %v349
        %421 = vmatpush.msra.mxu0 %v348
        %422 = vmatpush.msra.mxu0 %v347
        %423 = vmatpush.msra.mxu0 %v346
        %424 = vmatpush.msra.mxu0 %v345
        %425 = vmatmul.f32.gmra.mxu0 %v341
        %v426 = vpop.f32.mrf.mxu0
        %v427 = vadd.f32 0.0, %v426
        %428 = vdwg.mxu0
        %429 = vmatpush.msra.mxu0 %v376
        %430 = vmatpush.msra.mxu0 %v375
        %431 = vmatpush.msra.mxu0 %v374
        %432 = vmatpush.msra.mxu0 %v373
        %433 = vmatpush.msra.mxu0 %v372
        %434 = vmatpush.msra.mxu0 %v371
        %435 = vmatpush.msra.mxu0 %v370
        %436 = vmatpush.msra.mxu0 %v369
        %437 = vmatpush.msra.mxu0 %v368
        %438 = vmatpush.msra.mxu0 %v367
        %439 = vmatpush.msra.mxu0 %v366
        %440 = vmatpush.msra.mxu0 %v365
        %441 = vmatpush.msra.mxu0 %v364
        %442 = vmatpush.msra.mxu0 %v363
        %443 = vmatpush.msra.mxu0 %v362
        %444 = vmatpush.msra.mxu0 %v361
        %445 = vmatmul.f32.gmra.mxu0 %v342
        %v446 = vpop.f32.mrf.mxu0
        %v447 = vadd.f32 %v427, %v446
        %448 = vdwg.mxu0
        %449 = vmatpush.msra.mxu0 %v392
        %450 = vmatpush.msra.mxu0 %v391
        %451 = vmatpush.msra.mxu0 %v390
        %452 = vmatpush.msra.mxu0 %v389
        %453 = vmatpush.msra.mxu0 %v388
        %454 = vmatpush.msra.mxu0 %v387
        %455 = vmatpush.msra.mxu0 %v386
        %456 = vmatpush.msra.mxu0 %v385
        %457 = vmatpush.msra.mxu0 %v384
        %458 = vmatpush.msra.mxu0 %v383
        %459 = vmatpush.msra.mxu0 %v382
        %460 = vmatpush.msra.mxu0 %v381
        %461 = vmatpush.msra.mxu0 %v380
        %462 = vmatpush.msra.mxu0 %v379
        %463 = vmatpush.msra.mxu0 %v378
        %464 = vmatpush.msra.mxu0 %v377
        %465 = vmatmul.f32.gmra.mxu0 %v343
        %v466 = vpop.f32.mrf.mxu0
        %v467 = vadd.f32 %v447, %v466
        %468 = vdwg.mxu0
        %469 = vmatpush.msra.mxu0 %v408
        %470 = vmatpush.msra.mxu0 %v407
        %471 = vmatpush.msra.mxu0 %v406
        %472 = vmatpush.msra.mxu0 %v405
        %473 = vmatpush.msra.mxu0 %v404
        %474 = vmatpush.msra.mxu0 %v403
        %475 = vmatpush.msra.mxu0 %v402
        %476 = vmatpush.msra.mxu0 %v401
        %477 = vmatpush.msra.mxu0 %v400
        %478 = vmatpush.msra.mxu0 %v399
        %479 = vmatpush.msra.mxu0 %v398
        %480 = vmatpush.msra.mxu0 %v397
        %481 = vmatpush.msra.mxu0 %v396
        %482 = vmatpush.msra.mxu0 %v395
        %483 = vmatpush.msra.mxu0 %v394
        %484 = vmatpush.msra.mxu0 %v393
        %485 = vmatmul.f32.gmra.mxu0 %v344
        %v486 = vpop.f32.mrf.mxu0
        %v487 = vadd.f32 %v467, %v486
        %488 = vdwg.mxu0
        %v489 = vmul.f32 %v341, %v341
        %v490 = vmul.f32 %v342, %v342
        %v491 = vmul.f32 %v343, %v343
        %v492 = vmul.f32 %v344, %v344
        %493 = vmatpush.msra.mxu0 %v360
        %494 = vmatpush.msra.mxu0 %v359
        %495 = vmatpush.msra.mxu0 %v358
        %496 = vmatpush.msra.mxu0 %v357
        %497 = vmatpush.msra.mxu0 %v356
        %498 = vmatpush.msra.mxu0 %v355
        %499 = vmatpush.msra.mxu0 %v354
        %500 = vmatpush.msra.mxu0 %v353
        %501 = vmatpush.msra.mxu0 %v352
        %502 = vmatpush.msra.mxu0 %v351
        %503 = vmatpush.msra.mxu0 %v350
        %504 = vmatpush.msra.mxu0 %v349
        %505 = vmatpush.msra.mxu0 %v348
        %506 = vmatpush.msra.mxu0 %v347
        %507 = vmatpush.msra.mxu0 %v346
        %508 = vmatpush.msra.mxu0 %v345
        %509 = vmatmul.f32.gmra.mxu0 %v489
        %v510 = vpop.f32.mrf.mxu0
        %v511 = vadd.f32 0.0, %v510
        %512 = vdwg.mxu0
        %513 = vmatpush.msra.mxu0 %v376
        %514 = vmatpush.msra.mxu0 %v375
        %515 = vmatpush.msra.mxu0 %v374
        %516 = vmatpush.msra.mxu0 %v373
        %517 = vmatpush.msra.mxu0 %v372
        %518 = vmatpush.msra.mxu0 %v371
        %519 = vmatpush.msra.mxu0 %v370
        %520 = vmatpush.msra.mxu0 %v369
        %521 = vmatpush.msra.mxu0 %v368
        %522 = vmatpush.msra.mxu0 %v367
        %523 = vmatpush.msra.mxu0 %v366
        %524 = vmatpush.msra.mxu0 %v365
        %525 = vmatpush.msra.mxu0 %v364
        %526 = vmatpush.msra.mxu0 %v363
        %527 = vmatpush.msra.mxu0 %v362
        %528 = vmatpush.msra.mxu0 %v361
        %529 = vmatmul.f32.gmra.mxu0 %v490
        %v530 = vpop.f32.mrf.mxu0
        %v531 = vadd.f32 %v511, %v530
        %532 = vdwg.mxu0
        %533 = vmatpush.msra.mxu0 %v392
        %534 = vmatpush.msra.mxu0 %v391
        %535 = vmatpush.msra.mxu0 %v390
        %536 = vmatpush.msra.mxu0 %v389
        %537 = vmatpush.msra.mxu0 %v388
        %538 = vmatpush.msra.mxu0 %v387
        %539 = vmatpush.msra.mxu0 %v386
        %540 = vmatpush.msra.mxu0 %v385
        %541 = vmatpush.msra.mxu0 %v384
        %542 = vmatpush.msra.mxu0 %v383
        %543 = vmatpush.msra.mxu0 %v382
        %544 = vmatpush.msra.mxu0 %v381
        %545 = vmatpush.msra.mxu0 %v380
        %546 = vmatpush.msra.mxu0 %v379
        %547 = vmatpush.msra.mxu0 %v378
        %548 = vmatpush.msra.mxu0 %v377
        %549 = vmatmul.f32.gmra.mxu0 %v491
        %v550 = vpop.f32.mrf.mxu0
        %v551 = vadd.f32 %v531, %v550
        %552 = vdwg.mxu0
        %553 = vmatpush.msra.mxu0 %v408
        %554 = vmatpush.msra.mxu0 %v407
        %555 = vmatpush.msra.mxu0 %v406
        %556 = vmatpush.msra.mxu0 %v405
        %557 = vmatpush.msra.mxu0 %v404
        %558 = vmatpush.msra.mxu0 %v403
        %559 = vmatpush.msra.mxu0 %v402
        %560 = vmatpush.msra.mxu0 %v401
        %561 = vmatpush.msra.mxu0 %v400
        %562 = vmatpush.msra.mxu0 %v399
        %563 = vmatpush.msra.mxu0 %v398
        %564 = vmatpush.msra.mxu0 %v397
        %565 = vmatpush.msra.mxu0 %v396
        %566 = vmatpush.msra.mxu0 %v395
        %567 = vmatpush.msra.mxu0 %v394
        %568 = vmatpush.msra.mxu0 %v393
        %569 = vmatmul.f32.gmra.mxu0 %v492
        %v570 = vpop.f32.mrf.mxu0
        %v571 = vadd.f32 %v551, %v570
        %572 = vdwg.mxu0
        %v573 = vmul.f32 %v487, %v487
        %v574 = vsub.f32 %v571, %v573
        %v575 = vadd.f32 %v574, 1e-05
        %v576 = vrsqrt.pop %v575
        %v577 = vmul.f32 %v576, %v575
        %v578 = vmul.f32 %v577, %v576
        %v579 = vmul.f32 0.5, %v578
        %v580 = vsub.f32 1.5, %v579
        %v581 = vmul.f32 %v576, %v580
        %vm582 = vweird.f32 %v575
        %vm583 = vweird.f32 %v576
        %vm584 = vmor %vm582, %vm583
        %v585 = vsel %vm584, %v576, %v581
        %v586 = vld [vmem:[%s2] sm:$0xff]
        %v587 = vld [vmem:[%s2 + $0x8] sm:$0xff]
        %v588 = vld [vmem:[%s2 + $0x10] sm:$0xff]
        %v589 = vld [vmem:[%s2 + $0x18] sm:$0xff]
        %v590 = vld [vmem:[%s2 + $0x20] sm:$0xff]
        %v591 = vld [vmem:[%s2 + $0x28] sm:$0xff]
        %v592 = vld [vmem:[%s2 + $0x30] sm:$0xff]
        %v593 = vld [vmem:[%s2 + $0x38] sm:$0xff]
        %v594 = vld [vmem:[%s2 + $0x40] sm:$0xff]
        %v595 = vld [vmem:[%s2 + $0x48] sm:$0xff]
        %v596 = vld [vmem:[%s2 + $0x50] sm:$0xff]
        %v597 = vld [vmem:[%s2 + $0x58] sm:$0xff]
        %v598 = vld [vmem:[%s2 + $0x60] sm:$0xff]
        %v599 = vld [vmem:[%s2 + $0x68] sm:$0xff]
        %v600 = vld [vmem:[%s2 + $0x70] sm:$0xff]
        %v601 = vld [vmem:[%s2 + $0x78] sm:$0xff]
        %v602 = vld [vmem:[%s2 + $0x80] sm:$0xff]
        %v603 = vld [vmem:[%s2 + $0x88] sm:$0xff]
        %v604 = vld [vmem:[%s2 + $0x90] sm:$0xff]
        %v605 = vld [vmem:[%s2 + $0x98] sm:$0xff]
        %v606 = vld [vmem:[%s2 + $0xa0] sm:$0xff]
        %v607 = vld [vmem:[%s2 + $0xa8] sm:$0xff]
        %v608 = vld [vmem:[%s2 + $0xb0] sm:$0xff]
        %v609 = vld [vmem:[%s2 + $0xb8] sm:$0xff]
        %v610 = vld [vmem:[%s2 + $0xc0] sm:$0xff]
        %v611 = vld [vmem:[%s2 + $0xc8] sm:$0xff]
        %v612 = vld [vmem:[%s2 + $0xd0] sm:$0xff]
        %v613 = vld [vmem:[%s2 + $0xd8] sm:$0xff]
        %v614 = vld [vmem:[%s2 + $0xe0] sm:$0xff]
        %v615 = vld [vmem:[%s2 + $0xe8] sm:$0xff]
        %v616 = vld [vmem:[%s2 + $0xf0] sm:$0xff]
        %v617 = vld [vmem:[%s2 + $0xf8] sm:$0xff]
        %v618 = vld [vmem:[%s2 + $0x100] sm:$0xff]
        %v619 = vld [vmem:[%s2 + $0x108] sm:$0xff]
        %v620 = vld [vmem:[%s2 + $0x110] sm:$0xff]
        %v621 = vld [vmem:[%s2 + $0x118] sm:$0xff]
        %v622 = vld [vmem:[%s2 + $0x120] sm:$0xff]
        %v623 = vld [vmem:[%s2 + $0x128] sm:$0xff]
        %v624 = vld [vmem:[%s2 + $0x130] sm:$0xff]
        %v625 = vld [vmem:[%s2 + $0x138] sm:$0xff]
        %v626 = vld [vmem:[%s2 + $0x140] sm:$0xff]
        %v627 = vld [vmem:[%s2 + $0x148] sm:$0xff]
        %v628 = vld [vmem:[%s2 + $0x150] sm:$0xff]
        %v629 = vld [vmem:[%s2 + $0x158] sm:$0xff]
        %v630 = vld [vmem:[%s2 + $0x160] sm:$0xff]
        %v631 = vld [vmem:[%s2 + $0x168] sm:$0xff]
        %v632 = vld [vmem:[%s2 + $0x170] sm:$0xff]
        %v633 = vld [vmem:[%s2 + $0x178] sm:$0xff]
        %v634 = vld [vmem:[%s2 + $0x180] sm:$0xff]
        %v635 = vld [vmem:[%s2 + $0x188] sm:$0xff]
        %v636 = vld [vmem:[%s2 + $0x190] sm:$0xff]
        %v637 = vld [vmem:[%s2 + $0x198] sm:$0xff]
        %v638 = vld [vmem:[%s2 + $0x1a0] sm:$0xff]
        %v639 = vld [vmem:[%s2 + $0x1a8] sm:$0xff]
        %v640 = vld [vmem:[%s2 + $0x1b0] sm:$0xff]
        %v641 = vld [vmem:[%s2 + $0x1b8] sm:$0xff]
        %v642 = vld [vmem:[%s2 + $0x1c0] sm:$0xff]
        %v643 = vld [vmem:[%s2 + $0x1c8] sm:$0xff]
        %v644 = vld [vmem:[%s2 + $0x1d0] sm:$0xff]
        %v645 = vld [vmem:[%s2 + $0x1d8] sm:$0xff]
        %v646 = vld [vmem:[%s2 + $0x1e0] sm:$0xff]
        %v647 = vld [vmem:[%s2 + $0x1e8] sm:$0xff]
        %v648 = vld [vmem:[%s2 + $0x1f0] sm:$0xff]
        %v649 = vld [vmem:[%s2 + $0x1f8] sm:$0xff]
        %650 = vmatpush.msra.mxu0 %v601
        %651 = vmatpush.msra.mxu0 %v600
        %652 = vmatpush.msra.mxu0 %v599
        %653 = vmatpush.msra.mxu0 %v598
        %654 = vmatpush.msra.mxu0 %v597
        %655 = vmatpush.msra.mxu0 %v596
        %656 = vmatpush.msra.mxu0 %v595
        %657 = vmatpush.msra.mxu0 %v594
        %658 = vmatpush.msra.mxu0 %v593
        %659 = vmatpush.msra.mxu0 %v592
        %660 = vmatpush.msra.mxu0 %v591
        %661 = vmatpush.msra.mxu0 %v590
        %662 = vmatpush.msra.mxu0 %v589
        %663 = vmatpush.msra.mxu0 %v588
        %664 = vmatpush.msra.mxu0 %v587
        %665 = vmatpush.msra.mxu0 %v586
        %666 = vmatmul.f32.gmra.mxu0 %v341
        %v667 = vpop.f32.mrf.mxu0
        %v668 = vadd.f32 0.0, %v667
        %669 = vdwg.mxu0
        %670 = vmatpush.msra.mxu0 %v617
        %671 = vmatpush.msra.mxu0 %v616
        %672 = vmatpush.msra.mxu0 %v615
        %673 = vmatpush.msra.mxu0 %v614
        %674 = vmatpush.msra.mxu0 %v613
        %675 = vmatpush.msra.mxu0 %v612
        %676 = vmatpush.msra.mxu0 %v611
        %677 = vmatpush.msra.mxu0 %v610
        %678 = vmatpush.msra.mxu0 %v609
        %679 = vmatpush.msra.mxu0 %v608
        %680 = vmatpush.msra.mxu0 %v607
        %681 = vmatpush.msra.mxu0 %v606
        %682 = vmatpush.msra.mxu0 %v605
        %683 = vmatpush.msra.mxu0 %v604
        %684 = vmatpush.msra.mxu0 %v603
        %685 = vmatpush.msra.mxu0 %v602
        %686 = vmatmul.f32.gmra.mxu0 %v342
        %v687 = vpop.f32.mrf.mxu0
        %v688 = vadd.f32 %v668, %v687
        %689 = vdwg.mxu0
        %690 = vmatpush.msra.mxu0 %v633
        %691 = vmatpush.msra.mxu0 %v632
        %692 = vmatpush.msra.mxu0 %v631
        %693 = vmatpush.msra.mxu0 %v630
        %694 = vmatpush.msra.mxu0 %v629
        %695 = vmatpush.msra.mxu0 %v628
        %696 = vmatpush.msra.mxu0 %v627
        %697 = vmatpush.msra.mxu0 %v626
        %698 = vmatpush.msra.mxu0 %v625
        %699 = vmatpush.msra.mxu0 %v624
        %700 = vmatpush.msra.mxu0 %v623
        %701 = vmatpush.msra.mxu0 %v622
        %702 = vmatpush.msra.mxu0 %v621
        %703 = vmatpush.msra.mxu0 %v620
        %704 = vmatpush.msra.mxu0 %v619
        %705 = vmatpush.msra.mxu0 %v618
        %706 = vmatmul.f32.gmra.mxu0 %v343
        %v707 = vpop.f32.mrf.mxu0
        %v708 = vadd.f32 %v688, %v707
        %709 = vdwg.mxu0
        %710 = vmatpush.msra.mxu0 %v649
        %711 = vmatpush.msra.mxu0 %v648
        %712 = vmatpush.msra.mxu0 %v647
        %713 = vmatpush.msra.mxu0 %v646
        %714 = vmatpush.msra.mxu0 %v645
        %715 = vmatpush.msra.mxu0 %v644
        %716 = vmatpush.msra.mxu0 %v643
        %717 = vmatpush.msra.mxu0 %v642
        %718 = vmatpush.msra.mxu0 %v641
        %719 = vmatpush.msra.mxu0 %v640
        %720 = vmatpush.msra.mxu0 %v639
        %721 = vmatpush.msra.mxu0 %v638
        %722 = vmatpush.msra.mxu0 %v637
        %723 = vmatpush.msra.mxu0 %v636
        %724 = vmatpush.msra.mxu0 %v635
        %725 = vmatpush.msra.mxu0 %v634
        %726 = vmatmul.f32.gmra.mxu0 %v344
        %v727 = vpop.f32.mrf.mxu0
        %v728 = vadd.f32 %v708, %v727
        %729 = vdwg.mxu0
        %v730 = vld [vmem:[%s4] sm:$0xff]
        %v731 = vld [vmem:[%s4 + $0x8] sm:$0xff]
        %vm732 = vcmask 130048
        %v734 = vsel %vm732, %v487, 0
        %736 = vmatpush.msra.mxu0 0.0
        %737 = vmatpush.msra.mxu0 0.0
        %738 = vmatpush.msra.mxu0 0.0
        %739 = vmatpush.msra.mxu0 0.0
        %740 = vmatpush.msra.mxu0 0.0
        %741 = vmatpush.msra.mxu0 0.0
        %742 = vmatpush.msra.mxu0 0.0
        %743 = vmatpush.msra.mxu0 0.0
        %744 = vmatpush.msra.mxu0 0.0
        %745 = vmatpush.msra.mxu0 0.0
        %746 = vmatpush.msra.mxu0 0.0
        %747 = vmatpush.msra.mxu0 0.0
        %748 = vmatpush.msra.mxu0 0.0
        %749 = vmatpush.msra.mxu0 0.0
        %750 = vmatpush.msra.mxu0 %v731
        %751 = vmatpush.msra.mxu0 %v730
        %752 = vmatmul.f32.gmra.mxu0 %v734
        %v753 = vpop.f32.mrf.mxu0
        %v754 = vadd.f32 0.0, %v753
        %755 = vdwg.mxu0
        %v756 = vld [vmem:[%s5] sm:$0xff]
        %v757 = vld [vmem:[%s5 + $0x8] sm:$0xff]
        %v759 = vsel %vm732, %v585, 0
        %761 = vmatpush.msra.mxu0 0.0
        %762 = vmatpush.msra.mxu0 0.0
        %763 = vmatpush.msra.mxu0 0.0
        %764 = vmatpush.msra.mxu0 0.0
        %765 = vmatpush.msra.mxu0 0.0
        %766 = vmatpush.msra.mxu0 0.0
        %767 = vmatpush.msra.mxu0 0.0
        %768 = vmatpush.msra.mxu0 0.0
        %769 = vmatpush.msra.mxu0 0.0
        %770 = vmatpush.msra.mxu0 0.0
        %771 = vmatpush.msra.mxu0 0.0
        %772 = vmatpush.msra.mxu0 0.0
        %773 = vmatpush.msra.mxu0 0.0
        %774 = vmatpush.msra.mxu0 0.0
        %775 = vmatpush.msra.mxu0 %v757
        %776 = vmatpush.msra.mxu0 %v756
        %777 = vmatmul.f32.gmra.mxu0 %v759
        %v778 = vpop.f32.mrf.mxu0
        %v779 = vadd.f32 0.0, %v778
        %780 = vdwg.mxu0
        %v781 = vsub.f32 %v728, %v754
        %v782 = vmul.f32 %v781, %v779
        %v783 = vld [vmem:[%s3] sm:$0x1]
        %v785 = vperm.slane %v783, 0
        %v787 = vadd.f32 %v782, %v785
        %v788 = vxor.u32 %v787, 2147483648
        %v789 = vmul.f32 %v788, 1.442695
        %v790 = vpow.pop %v789
        %v791 = vadd.f32 %v790, 1.0
        %v792 = vrcp.pop %v791
        %v793 = vmul.f32 %v791, %v792
        %v794 = vsub.f32 1.0, %v793
        %v795 = vmul.f32 %v792, %v794
        %v796 = vadd.f32 %v792, %v795
        %vm797 = vweird.f32 %v791
        %vm798 = vweird.f32 %v792
        %vm799 = vmor %vm797, %vm798
        %v800 = vsel %vm799, %v792, %v796
        %v801 = vand.u32 2147483647, %v791
        %vm802 = vcmp.eq.f32.partialorder %v801, 8.507059e+37
        %v803 = vand.u32 %v791, 2147483648
        %v804 = vor.u32 1.1754944e-38, %v803
        %v805 = vsel %vm802, %v804, %v800
        %v806 = vmul.f32 1.0, %v805
        %v807 = vmul.f32 %v787, %v806
        %v808 = vld [vmem:[#allocation5] sm:$0xff]
        %v809 = vld [vmem:[#allocation5 + $0x8] sm:$0xff]
        %v810 = vld [vmem:[#allocation5 + $0x10] sm:$0xff]
        %v811 = vld [vmem:[#allocation5 + $0x18] sm:$0xff]
        %v812 = vld [vmem:[#allocation5 + $0x20] sm:$0xff]
        %v813 = vld [vmem:[#allocation5 + $0x28] sm:$0xff]
        %v814 = vld [vmem:[#allocation5 + $0x30] sm:$0xff]
        %v815 = vld [vmem:[#allocation5 + $0x38] sm:$0xff]
        %v816 = vld [vmem:[#allocation5 + $0x40] sm:$0xff]
        %v817 = vld [vmem:[#allocation5 + $0x48] sm:$0xff]
        %v818 = vld [vmem:[#allocation5 + $0x50] sm:$0xff]
        %v819 = vld [vmem:[#allocation5 + $0x58] sm:$0xff]
        %v820 = vld [vmem:[#allocation5 + $0x60] sm:$0xff]
        %v821 = vld [vmem:[#allocation5 + $0x68] sm:$0xff]
        %v822 = vld [vmem:[#allocation5 + $0x70] sm:$0xff]
        %v823 = vld [vmem:[#allocation5 + $0x78] sm:$0xff]
        %v824 = vld [vmem:[#allocation5 + $0x80] sm:$0xff]
        %v825 = vld [vmem:[#allocation5 + $0x88] sm:$0xff]
        %v826 = vld [vmem:[#allocation5 + $0x90] sm:$0xff]
        %v827 = vld [vmem:[#allocation5 + $0x98] sm:$0xff]
        %v828 = vld [vmem:[#allocation5 + $0xa0] sm:$0xff]
        %v829 = vld [vmem:[#allocation5 + $0xa8] sm:$0xff]
        %v830 = vld [vmem:[#allocation5 + $0xb0] sm:$0xff]
        %v831 = vld [vmem:[#allocation5 + $0xb8] sm:$0xff]
        %v832 = vld [vmem:[#allocation5 + $0xc0] sm:$0xff]
        %v833 = vld [vmem:[#allocation5 + $0xc8] sm:$0xff]
        %v834 = vld [vmem:[#allocation5 + $0xd0] sm:$0xff]
        %v835 = vld [vmem:[#allocation5 + $0xd8] sm:$0xff]
        %v836 = vld [vmem:[#allocation5 + $0xe0] sm:$0xff]
        %v837 = vld [vmem:[#allocation5 + $0xe8] sm:$0xff]
        %v838 = vld [vmem:[#allocation5 + $0xf0] sm:$0xff]
        %v839 = vld [vmem:[#allocation5 + $0xf8] sm:$0xff]
        %v840 = vld [vmem:[#allocation5 + $0x100] sm:$0xff]
        %v841 = vld [vmem:[#allocation5 + $0x108] sm:$0xff]
        %v842 = vld [vmem:[#allocation5 + $0x110] sm:$0xff]
        %v843 = vld [vmem:[#allocation5 + $0x118] sm:$0xff]
        %v844 = vld [vmem:[#allocation5 + $0x120] sm:$0xff]
        %v845 = vld [vmem:[#allocation5 + $0x128] sm:$0xff]
        %v846 = vld [vmem:[#allocation5 + $0x130] sm:$0xff]
        %v847 = vld [vmem:[#allocation5 + $0x138] sm:$0xff]
        %v848 = vld [vmem:[#allocation5 + $0x140] sm:$0xff]
        %v849 = vld [vmem:[#allocation5 + $0x148] sm:$0xff]
        %v850 = vld [vmem:[#allocation5 + $0x150] sm:$0xff]
        %v851 = vld [vmem:[#allocation5 + $0x158] sm:$0xff]
        %v852 = vld [vmem:[#allocation5 + $0x160] sm:$0xff]
        %v853 = vld [vmem:[#allocation5 + $0x168] sm:$0xff]
        %v854 = vld [vmem:[#allocation5 + $0x170] sm:$0xff]
        %v855 = vld [vmem:[#allocation5 + $0x178] sm:$0xff]
        %v856 = vld [vmem:[#allocation5 + $0x180] sm:$0xff]
        %v857 = vld [vmem:[#allocation5 + $0x188] sm:$0xff]
        %v858 = vld [vmem:[#allocation5 + $0x190] sm:$0xff]
        %v859 = vld [vmem:[#allocation5 + $0x198] sm:$0xff]
        %v860 = vld [vmem:[#allocation5 + $0x1a0] sm:$0xff]
        %v861 = vld [vmem:[#allocation5 + $0x1a8] sm:$0xff]
        %v862 = vld [vmem:[#allocation5 + $0x1b0] sm:$0xff]
        %v863 = vld [vmem:[#allocation5 + $0x1b8] sm:$0xff]
        %v864 = vld [vmem:[#allocation5 + $0x1c0] sm:$0xff]
        %v865 = vld [vmem:[#allocation5 + $0x1c8] sm:$0xff]
        %v866 = vld [vmem:[#allocation5 + $0x1d0] sm:$0xff]
        %v867 = vld [vmem:[#allocation5 + $0x1d8] sm:$0xff]
        %v868 = vld [vmem:[#allocation5 + $0x1e0] sm:$0xff]
        %v869 = vld [vmem:[#allocation5 + $0x1e8] sm:$0xff]
        %v870 = vld [vmem:[#allocation5 + $0x1f0] sm:$0xff]
        %v871 = vld [vmem:[#allocation5 + $0x1f8] sm:$0xff]
        %v872 = vld [vmem:[%s7] sm:$0xf]
        %v874 = vperm.slane %v872, 0
        %v875 = vperm.slane %v872, 1
        %v876 = vperm.slane %v872, 2
        %v877 = vperm.slane %v872, 3
        %882 = vmatpush.msra.mxu0 %v868
        %883 = vmatpush.msra.mxu0 %v864
        %884 = vmatpush.msra.mxu0 %v860
        %885 = vmatpush.msra.mxu0 %v856
        %886 = vmatpush.msra.mxu0 %v852
        %887 = vmatpush.msra.mxu0 %v848
        %888 = vmatpush.msra.mxu0 %v844
        %889 = vmatpush.msra.mxu0 %v840
        %890 = vmatpush.msra.mxu0 %v836
        %891 = vmatpush.msra.mxu0 %v832
        %892 = vmatpush.msra.mxu0 %v828
        %893 = vmatpush.msra.mxu0 %v824
        %894 = vmatpush.msra.mxu0 %v820
        %895 = vmatpush.msra.mxu0 %v816
        %896 = vmatpush.msra.mxu0 %v812
        %897 = vmatpush.msra.mxu0 %v808
        %898 = vmatmul.f32.gmra.mxu0 %v807
        %v899 = vpop.f32.mrf.mxu0
        %v900 = vadd.f32 %v874, %v899
        %901 = vdwg.mxu0
        %902 = vmatpush.msra.mxu0 %v869
        %903 = vmatpush.msra.mxu0 %v865
        %904 = vmatpush.msra.mxu0 %v861
        %905 = vmatpush.msra.mxu0 %v857
        %906 = vmatpush.msra.mxu0 %v853
        %907 = vmatpush.msra.mxu0 %v849
        %908 = vmatpush.msra.mxu0 %v845
        %909 = vmatpush.msra.mxu0 %v841
        %910 = vmatpush.msra.mxu0 %v837
        %911 = vmatpush.msra.mxu0 %v833
        %912 = vmatpush.msra.mxu0 %v829
        %913 = vmatpush.msra.mxu0 %v825
        %914 = vmatpush.msra.mxu0 %v821
        %915 = vmatpush.msra.mxu0 %v817
        %916 = vmatpush.msra.mxu0 %v813
        %917 = vmatpush.msra.mxu0 %v809
        %918 = vmatmul.f32.gmra.mxu0 %v807
        %v919 = vpop.f32.mrf.mxu0
        %v920 = vadd.f32 %v875, %v919
        %921 = vdwg.mxu0
        %922 = vmatpush.msra.mxu0 %v870
        %923 = vmatpush.msra.mxu0 %v866
        %924 = vmatpush.msra.mxu0 %v862
        %925 = vmatpush.msra.mxu0 %v858
        %926 = vmatpush.msra.mxu0 %v854
        %927 = vmatpush.msra.mxu0 %v850
        %928 = vmatpush.msra.mxu0 %v846
        %929 = vmatpush.msra.mxu0 %v842
        %930 = vmatpush.msra.mxu0 %v838
        %931 = vmatpush.msra.mxu0 %v834
        %932 = vmatpush.msra.mxu0 %v830
        %933 = vmatpush.msra.mxu0 %v826
        %934 = vmatpush.msra.mxu0 %v822
        %935 = vmatpush.msra.mxu0 %v818
        %936 = vmatpush.msra.mxu0 %v814
        %937 = vmatpush.msra.mxu0 %v810
        %938 = vmatmul.f32.gmra.mxu0 %v807
        %v939 = vpop.f32.mrf.mxu0
        %v940 = vadd.f32 %v876, %v939
        %941 = vdwg.mxu0
        %942 = vmatpush.msra.mxu0 %v871
        %943 = vmatpush.msra.mxu0 %v867
        %944 = vmatpush.msra.mxu0 %v863
        %945 = vmatpush.msra.mxu0 %v859
        %946 = vmatpush.msra.mxu0 %v855
        %947 = vmatpush.msra.mxu0 %v851
        %948 = vmatpush.msra.mxu0 %v847
        %949 = vmatpush.msra.mxu0 %v843
        %950 = vmatpush.msra.mxu0 %v839
        %951 = vmatpush.msra.mxu0 %v835
        %952 = vmatpush.msra.mxu0 %v831
        %953 = vmatpush.msra.mxu0 %v827
        %954 = vmatpush.msra.mxu0 %v823
        %955 = vmatpush.msra.mxu0 %v819
        %956 = vmatpush.msra.mxu0 %v815
        %957 = vmatpush.msra.mxu0 %v811
        %958 = vmatmul.f32.gmra.mxu0 %v807
        %v959 = vpop.f32.mrf.mxu0
        %v960 = vadd.f32 %v877, %v959
        %961 = vdwg.mxu0
        %v962 = vxor.u32 %v900, 2147483648
        %v963 = vxor.u32 %v920, 2147483648
        %v964 = vxor.u32 %v940, 2147483648
        %v965 = vxor.u32 %v960, 2147483648
        %v966 = vmul.f32 %v962, 1.442695
        %v967 = vpow.pop %v966
        %v968 = vmul.f32 %v963, 1.442695
        %v969 = vpow.pop %v968
        %v970 = vmul.f32 %v964, 1.442695
        %v971 = vpow.pop %v970
        %v972 = vmul.f32 %v965, 1.442695
        %v973 = vpow.pop %v972
        %v974 = vadd.f32 %v967, 1.0
        %v975 = vadd.f32 %v969, 1.0
        %v976 = vadd.f32 %v971, 1.0
        %v977 = vadd.f32 %v973, 1.0
        %v978 = vrcp.pop %v974
        %v979 = vmul.f32 %v974, %v978
        %v980 = vsub.f32 1.0, %v979
        %v981 = vmul.f32 %v978, %v980
        %v982 = vadd.f32 %v978, %v981
        %vm983 = vweird.f32 %v974
        %vm984 = vweird.f32 %v978
        %vm985 = vmor %vm983, %vm984
        %v986 = vsel %vm985, %v978, %v982
        %v987 = vand.u32 2147483647, %v974
        %vm988 = vcmp.eq.f32.partialorder %v987, 8.507059e+37
        %v989 = vand.u32 %v974, 2147483648
        %v990 = vor.u32 1.1754944e-38, %v989
        %v991 = vsel %vm988, %v990, %v986
        %v992 = vmul.f32 1.0, %v991
        %v993 = vrcp.pop %v975
        %v994 = vmul.f32 %v975, %v993
        %v995 = vsub.f32 1.0, %v994
        %v996 = vmul.f32 %v993, %v995
        %v997 = vadd.f32 %v993, %v996
        %vm998 = vweird.f32 %v975
        %vm999 = vweird.f32 %v993
        %vm1000 = vmor %vm998, %vm999
        %v1001 = vsel %vm1000, %v993, %v997
        %v1002 = vand.u32 2147483647, %v975
        %vm1003 = vcmp.eq.f32.partialorder %v1002, 8.507059e+37
        %v1004 = vand.u32 %v975, 2147483648
        %v1005 = vor.u32 1.1754944e-38, %v1004
        %v1006 = vsel %vm1003, %v1005, %v1001
        %v1007 = vmul.f32 1.0, %v1006
        %v1008 = vrcp.pop %v976
        %v1009 = vmul.f32 %v976, %v1008
        %v1010 = vsub.f32 1.0, %v1009
        %v1011 = vmul.f32 %v1008, %v1010
        %v1012 = vadd.f32 %v1008, %v1011
        %vm1013 = vweird.f32 %v976
        %vm1014 = vweird.f32 %v1008
        %vm1015 = vmor %vm1013, %vm1014
        %v1016 = vsel %vm1015, %v1008, %v1012
        %v1017 = vand.u32 2147483647, %v976
        %vm1018 = vcmp.eq.f32.partialorder %v1017, 8.507059e+37
        %v1019 = vand.u32 %v976, 2147483648
        %v1020 = vor.u32 1.1754944e-38, %v1019
        %v1021 = vsel %vm1018, %v1020, %v1016
        %v1022 = vmul.f32 1.0, %v1021
        %v1023 = vrcp.pop %v977
        %v1024 = vmul.f32 %v977, %v1023
        %v1025 = vsub.f32 1.0, %v1024
        %v1026 = vmul.f32 %v1023, %v1025
        %v1027 = vadd.f32 %v1023, %v1026
        %vm1028 = vweird.f32 %v977
        %vm1029 = vweird.f32 %v1023
        %vm1030 = vmor %vm1028, %vm1029
        %v1031 = vsel %vm1030, %v1023, %v1027
        %v1032 = vand.u32 2147483647, %v977
        %vm1033 = vcmp.eq.f32.partialorder %v1032, 8.507059e+37
        %v1034 = vand.u32 %v977, 2147483648
        %v1035 = vor.u32 1.1754944e-38, %v1034
        %v1036 = vsel %vm1033, %v1035, %v1031
        %v1037 = vmul.f32 1.0, %v1036
        %v1038 = vmul.f32 %v900, %v992
        %v1039 = vmul.f32 %v920, %v1007
        %v1040 = vmul.f32 %v940, %v1022
        %v1041 = vmul.f32 %v960, %v1037
        %1042 = vst [vmem:[%s340] sm:$0xff] %v1038
        %1043 = vst [vmem:[%s340 + $0x8] sm:$0xff] %v1039
        %1044 = vst [vmem:[%s340 + $0x10] sm:$0xff] %v1040
        %1045 = vst [vmem:[%s340 + $0x18] sm:$0xff] %v1041
        %s1046 = sand.u32 %s207, 1
        %s1047 = scalar_lea.sflag [#allocation4], %s1046
        %s1048 = sand.u32 %s207, 1
        %s1049 = smul.addr %s1048, 32
        %s1050 = scalar_lea.vmem [#allocation7], %s1049
        // Predicated region
        $region61: #{tpu_custom_call.1} parent=51 // pred_check
          %p1051 = pneg %p217
        $region62: #{tpu_custom_call.1} parent=51 // pred_check_branch
          %1053 = sbr.rel (%p1051) target = $region64
        $region63: #{tpu_custom_call.1} parent=51 // pred_region
          %1055 = vsyncadd %s1047, 0
          %s1056 = smul.addr %s26, 4
          %s1057 = smul.addr %s1056, 8
          %s1058 = scalar_lea.hbm %s8, %s1057
          %s1060 = sshll.u32 %s1050, 4
          %s1061 = int_to_ptr.vmem [resolvable:$true] %s1060
          %s1062 = sshll.u32 %s1058, 4
          %s1063 = int_to_ptr.hbm [resolvable:$true] %s1062
          %1065 = dma.vmem_to_hbm [thread:$0]  %s1061, 512, %s1063, %s1047
        $region64: #{tpu_custom_call.1} parent=51 // pred_fallthru
          _
      $region52: #{tpu_custom_call.1} parent=5 // pred_fallthru
        _
      %p1066 = scmp.le.s32.totalorder 2, %s21
      // Predicated region
      $region65: #{tpu_custom_call.1} parent=5 // pred_check
        %p1067 = pneg %p1066
      $region66: #{tpu_custom_call.1} parent=5 // pred_check_branch
        %1069 = sbr.rel (%p1067) target = $region68
      $region67: #{tpu_custom_call.1} parent=5 // pred_region
        %s1070 = ssub.s32 %s21, 2
        // Predicated region
        $region69: #{tpu_custom_call.1} parent=67 // pred_check
          %p1071 = pneg %p223
        $region70: #{tpu_custom_call.1} parent=67 // pred_check_branch
          %1073 = sbr.rel (%p1071) target = $region72
        $region71: #{tpu_custom_call.1} parent=67 // pred_region
          %s1074 = sand.u32 %s208, 1
          %s1075 = scalar_lea.sflag [#allocation4], %s1074
          %s1076 = sand.u32 %s208, 1
          %s1077 = smul.addr %s1076, 32
          %s1078 = scalar_lea.vmem [#allocation7], %s1077
          %1080 = dma.done %s1075, 512
        $region72: #{tpu_custom_call.1} parent=67 // pred_fallthru
          _
      $region68: #{tpu_custom_call.1} parent=5 // pred_fallthru
        _
    $region6: #{tpu_custom_call.1} parent=1 // loop_footer
      %s25 = sadd.s32 1, %s21
    $region7: #{tpu_custom_call.1} parent=1 // loop_footer_branch
      %20 = sbr.rel target = $region3
    $region8: #{tpu_custom_call.1} parent=1 // loop_exit
      _
    %1081 = vsyncpa [#allocation3], 1
    %s1082 = scalar_lea.sflag [#allocation3], 1
    %1083 = vsyncpa %s1082, 1
    %1084 = vsyncpa [#allocation6], 1
    %1085 = vsyncpa [#allocation4], 1
    %s1086 = scalar_lea.sflag [#allocation4], 1
    %1087 = vsyncpa %s1086, 1

</llo_original>
